<compile_context>
chip_gen: v7x
topology: tpu7x:2x2x1
jax: 0.10.0
libtpu: 0.0.40
codegen_flags: <defaults>
</compile_context>

<pallas_src>
import jax
import jax.numpy as jnp
from jax.experimental import pallas as pl
from jax.experimental.pallas import tpu as pltpu


_LANE = 128
_SUBLANE = 8
_TM_MAX = 512            # rows per output tile
_TN_MAX = 2048           # vocab lanes per output tile: 512 x 2048 f32 = 4 MiB
_MIN_PALLAS_ELEMENTS = 1 << 14   # below this, pallas launch overhead dominates


def _round_up(x, m):
    return (x + m - 1) // m * m


def _onehot_kernel(x_ref, o_ref):
    # x_ref: (TM, 1) int32 indices; o_ref: (TM, TN) one-hot tile.
    tn = o_ref.shape[-1]
    col0 = pl.program_id(1) * tn                                   # vocab-tile offset
    col = jax.lax.broadcasted_iota(jnp.int32, o_ref.shape, 1)
    # Subtract the offset from the narrow (TM,1) index rather than adding it
    # to the full (TM,TN) iota: one narrow sub instead of a full-width add.
    o_ref[...] = (col == (x_ref[...] - col0)).astype(o_ref.dtype)


def one_hot(x, size, *, dtype=jnp.float32, tm=None, tn=None,
            min_pallas_elements=_MIN_PALLAS_ELEMENTS):
    """Pallas equivalent of OneHot(size).forward(x).

    x: integer array of any shape; returns `dtype` array of shape (*x.shape, size).
    Out-of-range / negative indices produce an all-zero row (matches
    jax.nn.one_hot; torch's eye().index_select would raise instead).
    """
    # TODO(synk): torch raises on out-of-range indices; add a debug_check if
    # strict error semantics are ever required.
    assert 1 <= size < 2**31, "vocab size must fit in int32"
    orig_shape = x.shape
    n = 1
    for s in orig_shape:
        n *= int(s)

    if n == 0:
        return jnp.zeros((*orig_shape, size), dtype=dtype)

    # Tiny problems: a pallas_call's fixed launch + DMA-setup cost dominates.
    if n * size < min_pallas_elements and tm is None and tn is None:
        return jax.nn.one_hot(x, size, dtype=dtype)

    flat2d = x.reshape(-1, 1).astype(jnp.int32)

    # --- vocab (lane) axis tile: fixed lane-dense tile, no divisor search ---
    if tn is None:
        if size <= _LANE:
            tn = size                       # full dim (allowed even if <128)
        else:
            tn = min(_TN_MAX, _round_up(size, _LANE))
    else:
        assert tn % _LANE == 0 or tn == size, \
            "tn must be a multiple of 128 (or equal to the full vocab size)"

    # --- row (sublane) axis tile ---
    tm_given = tm is not None
    if tm is None:
        tm = min(_TM_MAX, _round_up(n, _SUBLANE))
    else:
        assert tm % _SUBLANE == 0 or tm == n, \
            "tm must be a multiple of 8 (or equal to the flattened row count)"

    grid_rows = pl.cdiv(n, tm)
    grid_cols = pl.cdiv(size, tn)

    # v7x megacore: make sure a non-trivial problem has >=2 parallel tiles so
    # both TensorCores issue output DMA (no effect on v5e/v6e single-TC chips).
    if not tm_given and grid_rows == 1 and grid_cols == 1 and n > _SUBLANE:
        tm = _round_up(pl.cdiv(n, 2), _SUBLANE)
        grid_rows = pl.cdiv(n, tm)

    dtype_bytes = jnp.dtype(dtype).itemsize
    cost = pl.CostEstimate(
        flops=n * size,
        transcendentals=0,
        bytes_accessed=n * size * dtype_bytes + n * 4,
    )

    out = pl.pallas_call(
        _onehot_kernel,
        out_shape=jax.ShapeDtypeStruct((n, size), dtype),
        grid=(grid_rows, grid_cols),
        in_specs=[pl.BlockSpec((tm, 1), lambda i, j: (i, 0))],
        out_specs=pl.BlockSpec((tm, tn), lambda i, j: (i, j)),
        compiler_params=pltpu.CompilerParams(
            dimension_semantics=("parallel", "parallel")),
        cost_estimate=cost,
    )(flat2d)

    return out.reshape(*orig_shape, size)


if __name__ == "__main__":
    key = jax.random.PRNGKey(0)
    k1, k2 = jax.random.split(key)

    # Shapes consistent with the module's usage: integer index tensor + vocab size.
    size = 32
    batch, seq = 2, 8
    x = jax.random.randint(k1, (batch, seq), 0, size, dtype=jnp.int32)
    ref = jax.nn.one_hot(x, size, dtype=jnp.float32)

    # 1) Default wrapper on the tiny input (routes to the cheap fallback path).
    y_small = one_hot(x, size)
    jax.block_until_ready(y_small)
    assert y_small.shape == (batch, seq, size), y_small.shape
    assert y_small.dtype == jnp.float32
    assert bool(jnp.all(y_small == ref)), "mismatch (fallback path)"

    # 2) Force the Pallas kernel on the same tiny input.  n=16 > 8, so the
    #    megacore split kicks in and the grid has 2 row tiles; vocab tile is
    #    the full (32-lane) dim.
    y_forced = one_hot(x, size, min_pallas_elements=0)
    jax.block_until_ready(y_forced)
    assert y_forced.shape == (batch, seq, size), y_forced.shape
    assert y_forced.dtype == jnp.float32
    assert bool(jnp.all(y_forced == ref)), "mismatch (pallas, single-ish tile)"

    # 3) Multi-tile, ragged case: n=650 rows (ragged vs tm=512), size=300
    #    (ragged vs tn=128), exercising partial edge blocks on both axes and
    #    the j*TN offset in the kernel.
    size2 = 300
    x2 = jax.random.randint(k2, (5, 130), 0, size2, dtype=jnp.int32)
    ref2 = jax.nn.one_hot(x2, size2, dtype=jnp.float32)

    y2 = one_hot(x2, size2, tn=128)
    jax.block_until_ready(y2)
    assert y2.shape == (5, 130, size2), y2.shape
    assert bool(jnp.all(y2 == ref2)), "mismatch (pallas, multi vocab tiles)"

    # 4) Same input with the default lane-dense vocab tile (single partial
    #    vocab block of 384 lanes covering size=300).
    y3 = one_hot(x2, size2)
    jax.block_until_ready(y3)
    assert bool(jnp.all(y3 == ref2)), "mismatch (pallas, partial vocab block)"

    print("KERNEL_OK")
</pallas_src>

<mosaic_0001>
module attributes {stable_mosaic.version = 11 : i64} {
  func.func @_onehot_kernel(%arg0: i32, %arg1: i32, %arg2: memref<8x1xi32, #tpu.memory_space<vmem>>, %arg3: memref<8x32xf32, #tpu.memory_space<vmem>>) attributes {dimension_semantics = [#tpu.dimension_semantics<parallel>, #tpu.dimension_semantics<parallel>], iteration_bounds = array<i64: 2, 1>, scalar_prefetch = 0 : i64, scratch_operands = 0 : i64, tpu.core_type = #tpu.core_type<tc>, window_params = [{transform_indices = @transform_0, window_bounds = array<i64: 8, 1>}, {transform_indices = @transform_1, window_bounds = array<i64: 8, 32>}]} {
    %c32_i32 = arith.constant 32 : i32
    %0 = arith.muli %arg1, %c32_i32 : i32
    %1 = tpu.iota {dimensions = array<i32: 1>} : vector<8x32xi32>
    %c0 = arith.constant 0 : index
    %c0_0 = arith.constant 0 : index
    %2 = vector.load %arg2[%c0, %c0_0] : memref<8x1xi32, #tpu.memory_space<vmem>>, vector<8x1xi32>
    %3 = vector.broadcast %0 : i32 to vector<8x1xi32>
    %4 = arith.subi %2, %3 : vector<8x1xi32>
    %5 = vector.broadcast %4 : vector<8x1xi32> to vector<8x32xi32>
    %6 = arith.cmpi eq, %1, %5 : vector<8x32xi32>
    %7 = arith.extui %6 : vector<8x32xi1> to vector<8x32xi32>
    %8 = arith.sitofp %7 : vector<8x32xi32> to vector<8x32xf32>
    %c0_1 = arith.constant 0 : index
    %c0_2 = arith.constant 0 : index
    %9 = vector.load %arg3[%c0_1, %c0_2] : memref<8x32xf32, #tpu.memory_space<vmem>>, vector<8x32xf32>
    tpu.vector_store %arg3[%c0_1, %c0_2], %8 {strides = array<i32>} : memref<8x32xf32, #tpu.memory_space<vmem>>, vector<8x32xf32>,
    return
  }
  func.func @transform_0(%arg0: i32, %arg1: i32) -> (i32, i32) {
    %c0_i32 = arith.constant 0 : i32
    %c0_i32_0 = arith.constant 0 : i32
    return %arg0, %c0_i32 : i32, i32
  }
  func.func @transform_1(%arg0: i32, %arg1: i32) -> (i32, i32) {
    %c0_i32 = arith.constant 0 : i32
    return %arg0, %arg1 : i32, i32
  }
}

</mosaic_0001>

<llo_original>
// kernel: tpu_custom_call.1
$region0: #{tpu_custom_call.1}
  #allocation0 [shape = 'u32[]', space=smem, size = 0x4, offset = 0x4, fixed_abs, tag = 'smem constant byte address 0x4 - core index']
  #allocation1 [shape = 'u32[144,128]{1,0:T(1,128)}', space=vmem, size = 0x12000, scoped, tag = 'internal scratch']
  %s0 = inlined_call_operand.vmem [shape: s32[16,1], index: 0, kind: input, shape index: {}]
  %s1 = inlined_call_operand.hbm [shape: f32[16,32], index: 1, kind: output, shape index: {}]
  %s2 = sld [smem:[#allocation0]]
  $region37: #{tpu_custom_call.1} parent=0
    _
  %s4 = ssub.s32 1, %s2
  %s5 = scalar_select 0, %s4, %s2
  $region1: #{tpu_custom_call.1} parent=0
    #allocation2 [shape = 'u8[8192]{0}', space=vmem, size = 0x2000, scoped, tag = 'output window, operand 0']
    #allocation3 [shape = 's32[2]{0}', space=sflag, size = 0x8, scoped, tag = 'scoped memory for tpu_custom_call.1']
    %6 = vsyncpa [#allocation3], 0
    %s7 = scalar_lea.sflag [#allocation3], 1
    %8 = vsyncpa %s7, 0
    loop: start=0, step=1, limit=4
    $region2: #{tpu_custom_call.1} parent=1 // loop_pre_header
      _
    $region3: #{tpu_custom_call.1} parent=1 // loop_header
      %s10 = sphi 0, %s14
      %p11 = scmp.ge.s32.totalorder %s10, 4
      %s17 = sphi 0, %s29
      %s18 = sphi 0, %s25
      %s19 = sphi 0, %s17
      %s20 = sphi 0, %s18
      %s21 = sphi 0, %s19
      %s22 = sphi 0, %s20
      %s32 = sphi 0, %s34
      %s35 = sphi 0, %s32
      %s36 = sphi 0, %s35
      %s52 = sphi 0, %s36
      %s60 = sphi 0, %s62
      %s63 = sphi 0, %s60
      %s64 = sphi 0, %s63
      %s80 = sphi 0, %s64
    $region4: #{tpu_custom_call.1} parent=1 // loop_header_branch
      %13 = sbr.rel (%p11) target = $region8
    $region5: #{tpu_custom_call.1} parent=1 // loop_body
      %s15 = ssub.s32 %s10, 1
      %s16 = ssub.s32 %s10, 2
      %s23 = sadd.s32 1, %s18
      %p24 = scmp.ge.s32.totalorder %s23, 1
      %s25 = scalar_select %p24, 0, %s23
      %s26 = sadd.s32 1, %s17
      %s27 = scalar_select %p24, %s26, %s17
      %p28 = scmp.ge.s32.totalorder %s27, 2
      %s29 = scalar_select %p28, 0, %s27
      %s30 = ssub.s32 %s17, %s29
      %p31 = scmp.eq.s32.totalorder %s30, 0
      %s33 = sadd.s32 %s32, 1
      %s34 = scalar_select %p31, %s32, %s33
      %p37 = pneg %p31
      %p38 = scmp.eq.s32.totalorder %s10, 1
      %p39 = por %p37, %p38
      %p40 = scmp.ne.s32.totalorder %s32, %s35
      %p41 = scmp.eq.s32.totalorder %s10, 0
      %p42 = por %p40, %p41
      %p43 = scmp.ne.s32.totalorder %s32, %s35
      %p44 = scmp.eq.s32.totalorder %s15, 1
      %p45 = por %p43, %p44
      %p46 = scmp.ne.s32.totalorder %s35, %s36
      %p47 = scmp.eq.s32.totalorder %s15, 0
      %p48 = por %p46, %p47
      %p49 = scmp.ne.s32.totalorder %s35, %s36
      %p50 = scmp.eq.s32.totalorder %s16, 1
      %p51 = por %p49, %p50
      %p53 = scmp.ne.s32.totalorder %s36, %s52
      %p54 = scmp.eq.s32.totalorder %s16, 0
      %p55 = por %p53, %p54
      %s56 = ssub.s32 %s17, %s29
      %s57 = ssub.s32 %s18, %s25
      %s58 = sor.u32 %s56, %s57
      %p59 = scmp.eq.s32.totalorder %s58, 0
      %s61 = sadd.s32 %s60, 1
      %s62 = scalar_select %p59, %s60, %s61
      %p65 = pneg %p59
      %p66 = scmp.eq.s32.totalorder %s10, 1
      %p67 = por %p65, %p66
      %p68 = scmp.ne.s32.totalorder %s60, %s63
      %p69 = scmp.eq.s32.totalorder %s10, 0
      %p70 = por %p68, %p69
      %p71 = scmp.ne.s32.totalorder %s60, %s63
      %p72 = scmp.eq.s32.totalorder %s15, 1
      %p73 = por %p71, %p72
      %p74 = scmp.ne.s32.totalorder %s63, %s64
      %p75 = scmp.eq.s32.totalorder %s15, 0
      %p76 = por %p74, %p75
      %p77 = scmp.ne.s32.totalorder %s63, %s64
      %p78 = scmp.eq.s32.totalorder %s16, 1
      %p79 = por %p77, %p78
      %p81 = scmp.ne.s32.totalorder %s64, %s80
      %p82 = scmp.eq.s32.totalorder %s16, 0
      %p83 = por %p81, %p82
      %p84 = scmp.le.s32.totalorder 1, %s10
      %p85 = scmp.lt.s32.totalorder %s10, 3
      %p86 = pnand %p84, %p85
      %p87 = pneg %p86
      // Predicated region
      $region9: #{tpu_custom_call.1} parent=5 // pred_check
        _
      $region10: #{tpu_custom_call.1} parent=5 // pred_check_branch
        %89 = sbr.rel (%p86) target = $region12
      $region11: #{tpu_custom_call.1} parent=5 // pred_region
        %s90 = ssub.s32 %s10, 1
      $region12: #{tpu_custom_call.1} parent=5 // pred_fallthru
        _
      %p91 = scmp.lt.s32.totalorder %s10, 2
      // Predicated region
      $region13: #{tpu_custom_call.1} parent=5 // pred_check
        %p92 = pneg %p91
      $region14: #{tpu_custom_call.1} parent=5 // pred_check_branch
        %94 = sbr.rel (%p92) target = $region16
      $region15: #{tpu_custom_call.1} parent=5 // pred_region
        // Predicated region
        $region17: #{tpu_custom_call.1} parent=15 // pred_check
          %p95 = pneg %p42
        $region18: #{tpu_custom_call.1} parent=15 // pred_check_branch
          %97 = sbr.rel (%p95) target = $region20
        $region19: #{tpu_custom_call.1} parent=15 // pred_region
          %p98 = scmp.lt.s32.totalorder %s17, 1
          %s99 = scalar_select %p98, %s17, 1
          %s100 = smul.addr %s99, 8
          %s101 = scalar_lea.vmem %s0, %s100
        $region20: #{tpu_custom_call.1} parent=15 // pred_fallthru
          _
      $region16: #{tpu_custom_call.1} parent=5 // pred_fallthru
        _
      %p102 = scmp.le.s32.totalorder 1, %s10
      %p103 = scmp.lt.s32.totalorder %s10, 3
      %p104 = pnand %p102, %p103
      %p105 = pneg %p104
      // Predicated region
      $region21: #{tpu_custom_call.1} parent=5 // pred_check
        _
      $region22: #{tpu_custom_call.1} parent=5 // pred_check_branch
        %107 = sbr.rel (%p104) target = $region24
      $region23: #{tpu_custom_call.1} parent=5 // pred_region
        %s108 = ssub.s32 %s10, 1
        %p109 = scmp.lt.s32.totalorder %s19, 1
        %s110 = scalar_select %p109, %s19, 1
        %s111 = smul.addr %s110, 8
        %s112 = scalar_lea.vmem %s0, %s111
        %p113 = pneg %p48
        %p114 = pneg %p45
        %p115 = pneg %p76
        %p116 = pneg %p73
        %s117 = sand.u32 %s63, 1
        %s118 = scalar_lea.sflag [#allocation3], %s117
        %s119 = sand.u32 %s63, 1
        %s120 = smul.addr %s119, 8
        %s121 = scalar_lea.vmem [#allocation2], %s120
        %p122 = scmp.lt.s32.totalorder %s19, 1
        %s123 = scalar_select %p122, %s19, 1
        %s124 = smul.addr %s123, 8
        %s125 = scalar_lea.vmem %s0, %s124
        %s126 = smul.u32 %s20, 32
        %v127 = vlaneseq
        %v128 = vand.u32 %v127, 127
        %v129 = vld [vmem:[%s125] sm:$0xff]
        %v130 = vstv %s126
        %v131 = vsub.s32 %v129, %v130
        %132 = vset.pattern.permute.xlu0 0
        %133 = vperm.xlu0 %132, %v131
        %v134 = vpop.permute.xlu0 %133
        %vm135 = vcmp.eq.s32.totalorder %v128, %v134
        %v136 = vsel %vm135, 1, 0
        %v137 = vcvt.s32.f32 %v136
        %vm138 = vcmask 261120
        %139 = vst.msk [vmem:[%s121] sm:$0xff] %vm138, %v137
        %s140 = sand.u32 %s63, 1
        %s141 = scalar_lea.sflag [#allocation3], %s140
        %s142 = sand.u32 %s63, 1
        %s143 = smul.addr %s142, 8
        %s144 = scalar_lea.vmem [#allocation2], %s143
        // Predicated region
        $region25: #{tpu_custom_call.1} parent=23 // pred_check
          %p145 = pneg %p73
        $region26: #{tpu_custom_call.1} parent=23 // pred_check_branch
          %147 = sbr.rel (%p145) target = $region28
        $region27: #{tpu_custom_call.1} parent=23 // pred_region
          %s149 = ssub.s32 128, 128
          %150 = vsyncadd %s141, %s149
          %s151 = sadd.s32 %s20, %s19
          %s152 = smul.addr %s151, 128
          %s153 = scalar_lea.hbm %s1, %s152
          %s155 = sshll.u32 %s144, 4
          %s156 = int_to_ptr.vmem [resolvable:$true] %s155
          %158 = dma.vmem_to_hbm [thread:$0]  %s156, 128, %s153, %s141
        $region28: #{tpu_custom_call.1} parent=23 // pred_fallthru
          _
      $region24: #{tpu_custom_call.1} parent=5 // pred_fallthru
        _
      %p159 = scmp.le.s32.totalorder 2, %s10
      // Predicated region
      $region29: #{tpu_custom_call.1} parent=5 // pred_check
        %p160 = pneg %p159
      $region30: #{tpu_custom_call.1} parent=5 // pred_check_branch
        %162 = sbr.rel (%p160) target = $region32
      $region31: #{tpu_custom_call.1} parent=5 // pred_region
        %s163 = ssub.s32 %s10, 2
        // Predicated region
        $region33: #{tpu_custom_call.1} parent=31 // pred_check
          %p164 = pneg %p79
        $region34: #{tpu_custom_call.1} parent=31 // pred_check_branch
          %166 = sbr.rel (%p164) target = $region36
        $region35: #{tpu_custom_call.1} parent=31 // pred_region
          %s167 = sand.u32 %s64, 1
          %s168 = scalar_lea.sflag [#allocation3], %s167
          %s169 = sand.u32 %s64, 1
          %s170 = smul.addr %s169, 8
          %s171 = scalar_lea.vmem [#allocation2], %s170
          %172 = dma.done %s168, 128
        $region36: #{tpu_custom_call.1} parent=31 // pred_fallthru
          _
      $region32: #{tpu_custom_call.1} parent=5 // pred_fallthru
        _
    $region6: #{tpu_custom_call.1} parent=1 // loop_footer
      %s14 = sadd.s32 1, %s10
    $region7: #{tpu_custom_call.1} parent=1 // loop_footer_branch
      %9 = sbr.rel target = $region3
    $region8: #{tpu_custom_call.1} parent=1 // loop_exit
      _
    %173 = vsyncpa [#allocation3], 1
    %s174 = scalar_lea.sflag [#allocation3], 1
    %175 = vsyncpa %s174, 1

</llo_original>
